<compile_context>
chip_gen: v7x
topology: tpu7x:2x2x1
jax: 0.10.0
libtpu: 0.0.40
codegen_flags: <defaults>
</compile_context>

<pallas_src>
import functools

import jax
import jax.numpy as jnp
from jax.experimental import pallas as pl
from jax.experimental.pallas import tpu as pltpu


def _cdiv(a, b):
    return -(-a // b)


def _round_down(x, m):
    return (x // m) * m


def _round_up(x, m):
    return _cdiv(x, m) * m


def _tpu_generation():
    """Best-effort chip generation: 'v5' / 'v6' / 'v7' / '' (unknown)."""
    kind = ""
    try:
        kind = jax.devices()[0].device_kind.lower()
    except Exception:
        pass
    for gen in ("v7", "v6", "v5"):
        if gen in kind:
            return gen
    return ""


def _sublane(itemsize):
    # Native sublane packing: 8 rows for 32-bit, 16 for 16-bit, 32 for 8-bit.
    return {4: 8, 2: 16, 1: 32}.get(itemsize, 8)


def _cw_margin_kernel(logits_ref, targets_ref, out_ref, *, batch, margin, upcast):
    """Clamped CW margin, reduced to one partial sum per batch tile.

    logits_ref:  (TB, C) logits tile (f32, or bf16 kept native on v6e/v7x)
    targets_ref: (TB, 1) int32 target labels
    out_ref:     (8, 128) f32; partial sum of this tile at [0, 0], zeros elsewhere
    """
    tb, c = logits_ref.shape
    logits = logits_ref[...]
    if upcast:
        logits = logits.astype(jnp.float32)
    tgt = targets_ref[...]                                        # (TB, 1) int32

    # One-hot expressed as compare + selects (no float one-hot tensor).
    class_ids = jax.lax.broadcasted_iota(jnp.int32, (tb, c), 1)
    is_target = class_ids == tgt                                  # (TB, C) bool

    zero = jnp.zeros((), dtype=logits.dtype)
    pin = jnp.asarray(-1000.0, dtype=logits.dtype)                # exact in bf16

    # self = logit at the target class (single nonzero term -> exact in bf16;
    # 0.0 if the target is out of range, matching the one_hot reference).
    self_logit = jnp.sum(jnp.where(is_target, logits, zero),
                         axis=1, keepdims=True).astype(jnp.float32)

    # other = row max with the target slot pinned to -1000 (pure selection),
    # same value as the reference's (1-onehot)*logits - onehot*1000.
    other_logit = jnp.max(jnp.where(is_target, pin, logits),
                          axis=1, keepdims=True).astype(jnp.float32)

    per_sample = jnp.maximum(self_logit - other_logit + jnp.float32(margin),
                             jnp.float32(0.0))                    # (TB, 1)

    # Mask padded rows of the ragged remainder tile so they contribute exactly
    # 0 (select also discards any NaN coming from garbage padded logits).
    row_ids = jax.lax.broadcasted_iota(jnp.int32, (tb, 1), 0)
    valid = (pl.program_id(0) * tb + row_ids) < batch
    tile_sum = jnp.sum(jnp.where(valid, per_sample, jnp.float32(0.0)))

    # Lane-dense, fully aligned (8, 128) output block -> one unmasked vst and
    # only ~4 KiB of HBM writeback per tile.
    r8 = jax.lax.broadcasted_iota(jnp.int32, (8, 128), 0)
    c128 = jax.lax.broadcasted_iota(jnp.int32, (8, 128), 1)
    out_ref[...] = jnp.where((r8 == 0) & (c128 == 0), tile_sum, jnp.float32(0.0))


def _per_row_vmem_bytes(num_classes, itemsize):
    # Per-row cost of the pipelined working set:
    #   2 x logits row (double-buffered)                     : 2 * C * itemsize
    #   2 x (TB, 1) i32 targets row, lane-padded to 128      : 2 * 512
    #   ~4 x (TB, 1) f32 intermediates (self/other/margin/..): 4 * 512
    return 2 * num_classes * itemsize + 6 * 512


def _choose_block_b(batch, num_classes, itemsize, gen):
    sub = _sublane(itemsize)
    # Total double-buffered VMEM budget: v7x has only 64 MiB physical per TC,
    # v5e/v6e have 128 MiB.  Unknown chip -> conservative.
    budget = (40 << 20) if gen in ("v7", "") else (64 << 20)
    per_row = _per_row_vmem_bytes(num_classes, itemsize)
    tb = max(sub, _round_down(budget // per_row, sub))
    if gen == "v7" and batch > 8 * sub:
        # Keep >= ~4 tiles so the "parallel" grid axis can shard over both TCs.
        tb = min(tb, _round_up(_cdiv(batch, 4), sub))
    return tb


def cw_loss(logits, targets, *, num_classes, margin=50.0, reduce=True, block_b=None):
    """Pallas CW loss.

    logits:  [B, C] float (f32 or bf16)
    targets: [B] integer class labels
    returns: scalar float32
    """
    batch, c = logits.shape
    assert c == num_classes
    targets2d = targets.astype(jnp.int32).reshape(batch, 1)

    itemsize = jnp.dtype(logits.dtype).itemsize
    gen = _tpu_generation()
    sub = _sublane(itemsize)

    # --- pick the batch tile ------------------------------------------------
    if block_b is None:
        tb = _choose_block_b(batch, c, itemsize, gen)
    else:
        tb = int(block_b)
    if tb >= batch:
        tb = batch                                  # full-extent block: always legal
    else:
        tb = max(sub, _round_down(tb, sub))         # sublane-aligned tile
        if tb >= batch:
            tb = batch
    num_tiles = _cdiv(batch, tb)

    # --- explicit scoped-VMEM limit sized to the actual footprint -----------
    footprint = tb * _per_row_vmem_bytes(c, itemsize) + 2 * (8 * 128 * 4)
    cap = (56 << 20) if gen in ("v7", "") else (112 << 20)
    vmem_limit = int(min(cap, max(32 << 20, footprint + (8 << 20))))
    # TODO(synk): for extreme num_classes (a single row's double-buffered
    # footprint beyond per-core VMEM) add a class-tiling grid axis with running
    # self/other accumulators (pl.when init/finalize on an "arbitrary" axis).

    # bf16 working set is kept native on v6e/v7x (bf16 VPU); v5e/unknown upcast.
    upcast = not (logits.dtype == jnp.bfloat16 and gen in ("v6", "v7"))

    kernel = functools.partial(_cw_margin_kernel, batch=batch,
                               margin=float(margin), upcast=upcast)

    partial = pl.pallas_call(
        kernel,
        out_shape=jax.ShapeDtypeStruct((num_tiles * 8, 128), jnp.float32),
        grid_spec=pltpu.PrefetchScalarGridSpec(
            num_scalar_prefetch=0,
            grid=(num_tiles,),
            in_specs=[
                pl.BlockSpec((tb, c), lambda i: (i, 0)),   # logits tile
                pl.BlockSpec((tb, 1), lambda i: (i, 0)),   # targets column
            ],
            out_specs=pl.BlockSpec((8, 128), lambda i: (i, 0)),
        ),
        compiler_params=pltpu.CompilerParams(
            # Batch tiles are independent -> allow megacore sharding on v7x.
            dimension_semantics=("parallel",),
            vmem_limit_bytes=vmem_limit,
        ),
    )(logits, targets2d)

    # Tiny finalize outside the kernel; divide by the *global* batch size.
    loss = -jnp.sum(partial)
    if reduce:
        loss = loss / batch
    return loss


def cw_loss_ref(logits, targets, *, num_classes, margin=50.0, reduce=True):
    """Pure-JAX reference matching the PyTorch semantics."""
    logits = logits.astype(jnp.float32)
    onehot = jax.nn.one_hot(targets, num_classes, dtype=jnp.float32)
    self_loss = jnp.sum(onehot * logits, axis=1)
    other_loss = jnp.max((1.0 - onehot) * logits - onehot * 1000.0, axis=1)
    loss = -jnp.sum(jnp.maximum(self_loss - other_loss + margin, 0.0))
    if reduce:
        loss = loss / logits.shape[0]
    return loss


if __name__ == "__main__":
    key = jax.random.PRNGKey(0)
    k1, k2, k3, k4 = jax.random.split(key, 4)

    # Case 1: small single-tile case (matches the module's typical usage).
    B, NUM_CLASSES = 8, 16
    logits = jax.random.normal(k1, (B, NUM_CLASSES), dtype=jnp.float32) * 5.0
    targets = jax.random.randint(k2, (B,), 0, NUM_CLASSES, dtype=jnp.int32)

    out = cw_loss(logits, targets, num_classes=NUM_CLASSES, margin=50.0, reduce=True)
    out = jax.block_until_ready(out)
    ref = cw_loss_ref(logits, targets, num_classes=NUM_CLASSES, margin=50.0, reduce=True)
    assert jnp.allclose(out, ref, atol=1e-4, rtol=1e-4), (out, ref)

    # Case 2: multi-tile grid with a ragged remainder tile (exercises the
    # batch tiling, the per-tile partial sums, the parallel grid axis and the
    # padded-row masking).
    B2, C2 = 100, 16
    logits2 = jax.random.normal(k3, (B2, C2), dtype=jnp.float32) * 5.0
    targets2 = jax.random.randint(k4, (B2,), 0, C2, dtype=jnp.int32)

    out2 = cw_loss(logits2, targets2, num_classes=C2, margin=50.0, reduce=True, block_b=32)
    out2 = jax.block_until_ready(out2)
    ref2 = cw_loss_ref(logits2, targets2, num_classes=C2, margin=50.0, reduce=True)
    assert jnp.allclose(out2, ref2, atol=1e-4, rtol=1e-4), (out2, ref2)

    # Case 3: bf16 logits accepted end-to-end (halves HBM traffic); math stays
    # exact (single-term sum + pure max selection) regardless of upcast path.
    out3 = cw_loss(logits.astype(jnp.bfloat16), targets, num_classes=NUM_CLASSES,
                   margin=50.0, reduce=True)
    out3 = jax.block_until_ready(out3)
    ref3 = cw_loss_ref(logits.astype(jnp.bfloat16), targets, num_classes=NUM_CLASSES,
                       margin=50.0, reduce=True)
    assert jnp.allclose(out3, ref3, atol=1e-3, rtol=1e-3), (out3, ref3)

    # Case 4: auto tile selection with a batch that is not a sublane multiple
    # (full-extent single block path).
    out4 = cw_loss(logits2, targets2, num_classes=C2, margin=50.0, reduce=True)
    out4 = jax.block_until_ready(out4)
    assert jnp.allclose(out4, ref2, atol=1e-4, rtol=1e-4), (out4, ref2)

    print("KERNEL_OK")
</pallas_src>

<mosaic_0001>
module attributes {stable_mosaic.version = 11 : i64} {
  func.func @_cw_margin_kernel(%arg0: i32, %arg1: memref<8x16xf32, #tpu.memory_space<vmem>>, %arg2: memref<8x1xi32, #tpu.memory_space<vmem>>, %arg3: memref<8x128xf32, #tpu.memory_space<vmem>>) attributes {dimension_semantics = [#tpu.dimension_semantics<parallel>], iteration_bounds = array<i64: 1>, scalar_prefetch = 0 : i64, scratch_operands = 0 : i64, tpu.core_type = #tpu.core_type<tc>, window_params = [{transform_indices = @transform_0, window_bounds = array<i64: 8, 16>}, {transform_indices = @transform_1, window_bounds = array<i64: 8, 1>}, {transform_indices = @transform_2, window_bounds = array<i64: 8, 128>}]} {
    %c0 = arith.constant 0 : index
    %c0_0 = arith.constant 0 : index
    %0 = vector.load %arg1[%c0, %c0_0] : memref<8x16xf32, #tpu.memory_space<vmem>>, vector<8x16xf32>
    %c0_1 = arith.constant 0 : index
    %c0_2 = arith.constant 0 : index
    %1 = vector.load %arg2[%c0_1, %c0_2] : memref<8x1xi32, #tpu.memory_space<vmem>>, vector<8x1xi32>
    %2 = tpu.iota {dimensions = array<i32: 1>} : vector<8x16xi32>
    %3 = vector.broadcast %1 : vector<8x1xi32> to vector<8x16xi32>
    %4 = arith.cmpi eq, %2, %3 : vector<8x16xi32>
    %cst = arith.constant 0.000000e+00 : f32
    %5 = vector.broadcast %cst : f32 to vector<8x16xf32>
    %6 = arith.select %4, %0, %5 : vector<8x16xi1>, vector<8x16xf32>
    %cst_3 = arith.constant dense<0.000000e+00> : vector<8xf32>
    %7 = vector.multi_reduction <add>, %6, %cst_3 [1] : vector<8x16xf32> to vector<8xf32>
    %8 = vector.shape_cast %7 : vector<8xf32> to vector<8x1xf32>
    %cst_4 = arith.constant -1.000000e+03 : f32
    %9 = vector.broadcast %cst_4 : f32 to vector<8x16xf32>
    %10 = arith.select %4, %9, %0 : vector<8x16xi1>, vector<8x16xf32>
    %cst_5 = arith.constant dense<0xFF800000> : vector<8xf32>
    %11 = vector.multi_reduction <maximumf>, %10, %cst_5 [1] : vector<8x16xf32> to vector<8xf32>
    %12 = vector.shape_cast %11 : vector<8xf32> to vector<8x1xf32>
    %13 = arith.subf %8, %12 : vector<8x1xf32>
    %cst_6 = arith.constant 5.000000e+01 : f32
    %14 = vector.broadcast %cst_6 : f32 to vector<8x1xf32>
    %15 = arith.addf %13, %14 : vector<8x1xf32>
    %cst_7 = arith.constant 0.000000e+00 : f32
    %16 = vector.broadcast %cst_7 : f32 to vector<8x1xf32>
    %17 = arith.maximumf %15, %16 : vector<8x1xf32>
    %18 = tpu.iota {dimensions = array<i32: 0>} : vector<8x1xi32>
    %c8_i32 = arith.constant 8 : i32
    %19 = arith.muli %arg0, %c8_i32 : i32
    %20 = vector.broadcast %19 : i32 to vector<8x1xi32>
    %21 = arith.addi %20, %18 : vector<8x1xi32>
    %c8_i32_8 = arith.constant 8 : i32
    %22 = vector.broadcast %c8_i32_8 : i32 to vector<8x1xi32>
    %23 = arith.cmpi slt, %21, %22 : vector<8x1xi32>
    %cst_9 = arith.constant 0.000000e+00 : f32
    %24 = vector.broadcast %cst_9 : f32 to vector<8x1xf32>
    %25 = arith.select %23, %17, %24 : vector<8x1xi1>, vector<8x1xf32>
    %26 = vector.shape_cast %25 : vector<8x1xf32> to vector<1x8x1xf32>
    %cst_10 = arith.constant dense<0.000000e+00> : vector<1xf32>
    %27 = vector.multi_reduction <add>, %26, %cst_10 [1, 2] : vector<1x8x1xf32> to vector<1xf32>
    %28 = vector.shape_cast %27 : vector<1xf32> to vector<1x1x1xf32>
    %29 = vector.extract %28[0, 0, 0] : f32 from vector<1x1x1xf32>
    %30 = tpu.iota {dimensions = array<i32: 0>} : vector<8x128xi32>
    %31 = tpu.iota {dimensions = array<i32: 1>} : vector<8x128xi32>
    %c0_i32 = arith.constant 0 : i32
    %32 = vector.broadcast %c0_i32 : i32 to vector<8x128xi32>
    %33 = arith.cmpi eq, %30, %32 : vector<8x128xi32>
    %c0_i32_11 = arith.constant 0 : i32
    %34 = vector.broadcast %c0_i32_11 : i32 to vector<8x128xi32>
    %35 = arith.cmpi eq, %31, %34 : vector<8x128xi32>
    %36 = arith.andi %33, %35 : vector<8x128xi1>
    %cst_12 = arith.constant 0.000000e+00 : f32
    %37 = vector.broadcast %29 : f32 to vector<8x128xf32>
    %38 = vector.broadcast %cst_12 : f32 to vector<8x128xf32>
    %39 = arith.select %36, %37, %38 : vector<8x128xi1>, vector<8x128xf32>
    %c0_13 = arith.constant 0 : index
    %c0_14 = arith.constant 0 : index
    %40 = vector.load %arg3[%c0_13, %c0_14] : memref<8x128xf32, #tpu.memory_space<vmem>>, vector<8x128xf32>
    tpu.vector_store %arg3[%c0_13, %c0_14], %39 {strides = array<i32>} : memref<8x128xf32, #tpu.memory_space<vmem>>, vector<8x128xf32>,
    return
  }
  func.func @transform_0(%arg0: i32) -> (i32, i32) {
    %c0_i32 = arith.constant 0 : i32
    %c0_i32_0 = arith.constant 0 : i32
    return %arg0, %c0_i32 : i32, i32
  }
  func.func @transform_1(%arg0: i32) -> (i32, i32) {
    %c0_i32 = arith.constant 0 : i32
    %c0_i32_0 = arith.constant 0 : i32
    return %arg0, %c0_i32 : i32, i32
  }
  func.func @transform_2(%arg0: i32) -> (i32, i32) {
    %c0_i32 = arith.constant 0 : i32
    %c0_i32_0 = arith.constant 0 : i32
    return %arg0, %c0_i32 : i32, i32
  }
}

</mosaic_0001>

<llo_original>
// kernel: tpu_custom_call.1
$region0: #{tpu_custom_call.1}
  #allocation0 [shape = 'u32[]', space=smem, size = 0x4, offset = 0x4, fixed_abs, tag = 'smem constant byte address 0x4 - core index']
  #allocation1 [shape = 'u32[144,128]{1,0:T(1,128)}', space=vmem, size = 0x12000, scoped, tag = 'internal scratch']
  %s0 = inlined_call_operand.vmem [shape: f32[8,16], index: 0, kind: input, shape index: {}]
  %s1 = inlined_call_operand.vmem [shape: s32[8,1], index: 1, kind: input, shape index: {}]
  %s2 = inlined_call_operand.hbm [shape: f32[8,128], index: 2, kind: output, shape index: {}]
  %s3 = sld [smem:[#allocation0]]
  $region18: #{tpu_custom_call.1} parent=0
    _
  %s5 = ssub.s32 1, %s3
  %s6 = scalar_select 0, %s5, %s3
  $region1: #{tpu_custom_call.1} parent=0
    #allocation2 [shape = 'u8[4096]{0}', space=vmem, size = 0x1000, scoped, tag = 'output window, operand 0, single buffered']
    #allocation3 [shape = 's32[1]{0}', space=sflag, size = 0x4, scoped, tag = 'scoped memory for tpu_custom_call.1']
    %7 = vsyncpa [#allocation3], 0
    // Predicated region
    $region2: #{tpu_custom_call.1} parent=1 // pred_check
      _
    $region3: #{tpu_custom_call.1} parent=1 // pred_check_branch
      %9 = sbr.rel (0) target = $region5
    $region4: #{tpu_custom_call.1} parent=1 // pred_region
      _
    $region5: #{tpu_custom_call.1} parent=1 // pred_fallthru
      _
    // Predicated region
    $region6: #{tpu_custom_call.1} parent=1 // pred_check
      _
    $region7: #{tpu_custom_call.1} parent=1 // pred_check_branch
      %11 = sbr.rel (0) target = $region9
    $region8: #{tpu_custom_call.1} parent=1 // pred_region
      _
    $region9: #{tpu_custom_call.1} parent=1 // pred_fallthru
      _
    %v12 = vld [vmem:[%s0] sm:$0xff]
    %v13 = vld [vmem:[%s1] sm:$0xff]
    %v14 = vlaneseq
    %v15 = vand.u32 %v14, 127
    %16 = vset.pattern.permute.xlu0 0
    %17 = vperm.xlu0 %16, %v13
    %v18 = vpop.permute.xlu0 %17
    %vm19 = vcmp.eq.s32.totalorder %v15, %v18
    %v20 = vsel %vm19, %v12, 0.0
    %vm21 = vcmask 130048
    %v22 = vsel %vm21, %v20, 0.0
    %23 = vadd.xlane.f32.xlu0 %v22
    %v24 = vpop.xlane.xlu0 %23
    %v25 = vsel %vm19, -1000.0, %v12
    %v26 = vsel %vm21, %v25, -inf
    %27 = vmax.xlane.f32.xlu0 %v26
    %v28 = vpop.xlane.xlu0 %27
    %v29 = vsub.f32 %v24, %v28
    %v30 = vadd.f32 %v29, 50.0
    %v31 = vmax.f32 %v30, 0.0
    %v32 = vlaneseq
    %v33 = vshrl.u32 %v32, 7
    %s34 = smul.u32 0, 8
    %v35 = vstv %s34
    %v36 = vadd.s32 %v35, %v33
    %vm37 = vcmp.lt.s32.totalorder %v36, 8
    %v38 = vsel %vm37, %v31, 0.0
    %vm39 = vcmask 7168
    %v40 = vsel %vm39, %v38, 0.0
    %41 = vadd.xlane.f32.xlu0 %v40
    %v42 = vpop.xlane.xlu0 %41
    %v43 = vrot.slane %v42, 4
    %v44 = vadd.f32 %v42, %v43
    %v45 = vrot.slane %v44, 2
    %v46 = vadd.f32 %v44, %v45
    %v47 = vrot.slane %v46, 1
    %v48 = vadd.f32 %v46, %v47
    %s49 = vtos %v48
    %vm50 = vcmp.eq.s32.totalorder %v33, 0
    %vm51 = vcmp.eq.s32.totalorder %v15, 0
    %vm52 = vmand %vm50, %vm51
    %v53 = vstv %s49
    %v54 = vsel %vm52, %v53, 0.0
    %55 = vst [vmem:[#allocation2] sm:$0xff] %v54
    // Predicated region
    $region10: #{tpu_custom_call.1} parent=1 // pred_check
      _
    $region11: #{tpu_custom_call.1} parent=1 // pred_check_branch
      %57 = sbr.rel (0) target = $region13
    $region12: #{tpu_custom_call.1} parent=1 // pred_region
      %s59 = ssub.s32 128, 128
      %60 = vsyncadd [#allocation3], %s59
      %s62 = sshll.u32 [#allocation2], 4
      %s63 = int_to_ptr.vmem [resolvable:$true] %s62
      %65 = dma.vmem_to_hbm [thread:$0]  %s63, 128, %s2, [#allocation3]
    $region13: #{tpu_custom_call.1} parent=1 // pred_fallthru
      _
    // Predicated region
    $region14: #{tpu_custom_call.1} parent=1 // pred_check
      _
    $region15: #{tpu_custom_call.1} parent=1 // pred_check_branch
      %67 = sbr.rel (0) target = $region17
    $region16: #{tpu_custom_call.1} parent=1 // pred_region
      %68 = dma.done [#allocation3], 128
    $region17: #{tpu_custom_call.1} parent=1 // pred_fallthru
      _
    %69 = vsyncpa [#allocation3], 1

</llo_original>
